<compile_context>
chip_gen: v7x
topology: tpu7x:2x2x1
jax: 0.10.0
libtpu: 0.0.40
codegen_flags: <defaults>
</compile_context>

<pallas_src>
import functools

import numpy as np
import jax
import jax.numpy as jnp
from jax.experimental import pallas as pl
from jax.experimental.pallas import tpu as pltpu


def _round_up(x, m):
    return (x + m - 1) // m * m


def _inverse_prior(prior):
    # mirrors DiverseExpertLoss.inverse_prior (sort-based rank flip)
    value = jnp.sort(prior)
    idx0 = jnp.argsort(prior)
    idx1 = jnp.argsort(idx0)
    idx2 = prior.shape[0] - 1 - idx1
    return value[idx2]


def _device_info():
    """(device_kind, tensorcores per device, VMEM capacity bytes)."""
    kind = ""
    try:
        kind = jax.devices()[0].device_kind.lower()
    except Exception:  # pragma: no cover - defensive
        pass
    if any(t in kind for t in ("lite", "v5e", "v6e", "v2", "v3")):
        cores = 1
    elif any(t in kind for t in ("v4", "v5p", "v7")):
        cores = 2          # megacore (v4/v5p) or 2 TCs/chip (v7x)
    else:
        cores = 1          # unknown -> safe default
    try:
        vmem_cap = int(pltpu.get_tpu_info().vmem_capacity_bytes)
    except Exception:      # pragma: no cover - older jax / query unavailable
        vmem_cap = 64 * 1024 * 1024   # conservative (v7x per-TC size)
    return kind, cores, vmem_cap


def _diverse_expert_loss_kernel(e1_ref, e2_ref, e3_ref, adj2_ref, adj3_ref,
                                tgt_ref, out_ref, *, n_total, tile_n,
                                tiles_per_split):
    s = pl.program_id(0)   # core split (parallel / core_parallel)
    i = pl.program_id(1)   # batch-tile reduction axis (arbitrary)

    @pl.when(i == 0)
    def _init():
        out_ref[...] = jnp.zeros_like(out_ref)

    rows, c = e1_ref.shape

    # Upcast per-tile inside VMEM; adj blocks are already f32 and resident.
    x1 = e1_ref[...].astype(jnp.float32)
    x2 = e2_ref[...].astype(jnp.float32) + adj2_ref[...]
    x3 = e3_ref[...].astype(jnp.float32) + adj3_ref[...]

    def lse(x):
        m = jnp.max(x, axis=-1, keepdims=True)
        return m + jnp.log(jnp.sum(jnp.exp(x - m), axis=-1, keepdims=True))

    tgt = tgt_ref[...]                                           # (rows, 1) i32
    col = jax.lax.broadcasted_iota(jnp.int32, (rows, c), 1)
    cls_mask = col == tgt

    # Linearity: one masked lane-reduce extracts the target logit of all
    # three (bias-adjusted) experts at once instead of three reduces.
    tgt_total = jnp.sum(jnp.where(cls_mask, x1 + x2 + x3, 0.0),
                        axis=-1, keepdims=True)

    per_row = lse(x1) + lse(x2) + lse(x3) - tgt_total            # (rows, 1)

    # Rows past N (partial / clamped overhang tiles) hold garbage: mask with
    # where (NOT multiply) so Inf/NaN there cannot poison the sum.
    row = jax.lax.broadcasted_iota(jnp.int32, (rows, 1), 0)
    logical_tile = s * tiles_per_split + i
    global_row = logical_tile * tile_n + row
    per_row = jnp.where(global_row < n_total, per_row, 0.0)

    out_ref[...] += jnp.sum(per_row)   # scalar broadcast into (1, 8, 128)


def diverse_expert_loss(target, head_logits, medium_logits, few_logits, reg,
                        cls_num_list, tau=2.0, max_tile_n=None):
    cls_num = jnp.asarray(cls_num_list, dtype=jnp.float32)
    prior = cls_num / jnp.sum(cls_num)
    inv_prior = _inverse_prior(prior)

    adj2 = jnp.log(prior + 1e-9)[None, :]                              # (1, C) f32
    adj3 = (jnp.log(prior + 1e-9) - tau * jnp.log(inv_prior + 1e-9))[None, :]

    n, c = head_logits.shape
    itemsize = jnp.dtype(head_logits.dtype).itemsize
    kind, cores, vmem_cap = _device_info()

    # --- batch tile sizing -------------------------------------------------
    # Aim for ~2 MiB of logits per expert per grid step; cap by a VMEM budget
    # that covers 2x-buffered inputs for all three experts plus ~4 f32
    # intermediates per element produced inside the kernel.
    target_bytes_per_expert = 2 * 1024 * 1024
    budget = int(vmem_cap * 0.45)
    bytes_per_row = c * (2 * 3 * itemsize + 4 * 4)
    cap_rows = max(8, (budget // bytes_per_row) // 8 * 8)
    want_rows = max(8, (target_bytes_per_expert // (c * itemsize)) // 8 * 8)
    tile_n = int(min(want_rows, cap_rows, 4096, _round_up(n, 8)))
    if max_tile_n is not None:
        tile_n = min(tile_n, max(8, _round_up(max_tile_n, 8)))

    n_tiles = (n + tile_n - 1) // tile_n
    num_splits = max(1, min(cores, n_tiles))
    tiles_per_split = (n_tiles + num_splits - 1) // num_splits
    last_tile = n_tiles - 1

    tgt = target.astype(jnp.int32).reshape(n, 1)

    kernel = functools.partial(_diverse_expert_loss_kernel, n_total=n,
                               tile_n=tile_n, tiles_per_split=tiles_per_split)

    # Clamp fully-out-of-range tile indices to the last valid block; their
    # contribution is zeroed by the logical-row mask inside the kernel.
    def logit_idx(s, i):
        return (jnp.minimum(s * tiles_per_split + i, last_tile), 0)

    logit_spec = pl.BlockSpec((tile_n, c), logit_idx)     # full class extent
    adj_spec = pl.BlockSpec((1, c), lambda s, i: (0, 0))  # resident f32 bias
    tgt_spec = pl.BlockSpec((tile_n, 1), logit_idx)

    if num_splits > 1 and "v7" in kind:
        split_sem = pltpu.CORE_PARALLEL     # engage both TCs on v7x
    else:
        split_sem = pltpu.PARALLEL          # documented megacore path v4/v5p
    dims = (split_sem, pltpu.ARBITRARY)

    vmem_limit = int(min(vmem_cap * 0.75, 100 * 1024 * 1024))

    cost = pl.CostEstimate(
        flops=10 * 3 * n * c,
        transcendentals=3 * n * c,
        bytes_accessed=3 * n * c * itemsize + n * 4 + 2 * c * 4
                       + num_splits * 8 * 128 * 4)

    partial_sums = pl.pallas_call(
        kernel,
        grid=(num_splits, tiles_per_split),
        out_shape=jax.ShapeDtypeStruct((num_splits, 8, 128), jnp.float32),
        in_specs=[logit_spec, logit_spec, logit_spec,
                  adj_spec, adj_spec, tgt_spec],
        out_specs=pl.BlockSpec((1, 8, 128), lambda s, i: (s, 0, 0)),
        compiler_params=pltpu.CompilerParams(
            dimension_semantics=dims,
            vmem_limit_bytes=vmem_limit),
        cost_estimate=cost,
    )(head_logits, medium_logits, few_logits, adj2, adj3, tgt)

    reg = jnp.asarray(reg, dtype=jnp.float32)
    return jnp.sum(partial_sums[:, 0, 0]) / jnp.float32(n) - reg


def _reference(target, e1, e2, e3, reg, cls_num_list, tau=2.0):
    # pure-JAX reference for sanity checking (f32 math, like the kernel)
    cls_num = jnp.asarray(cls_num_list, dtype=jnp.float32)
    prior = cls_num / jnp.sum(cls_num)
    inv_prior = _inverse_prior(prior)

    def ce(logits):
        logp = jax.nn.log_softmax(logits.astype(jnp.float32), axis=-1)
        return -jnp.mean(jnp.take_along_axis(logp, target[:, None], axis=-1))

    l = ce(e1.astype(jnp.float32))
    l = l + ce(e2.astype(jnp.float32) + jnp.log(prior + 1e-9))
    l = l + ce(e3.astype(jnp.float32) + jnp.log(prior + 1e-9)
               - tau * jnp.log(inv_prior + 1e-9))
    return l - reg


if __name__ == "__main__":
    key = jax.random.PRNGKey(0)

    # --- test 1: tiny f32 case (single tile, ragged class dim C=10) --------
    N, C = 8, 10
    cls_num_list = [100, 60, 40, 25, 15, 10, 8, 5, 3, 2]   # long-tailed counts
    k1, k2, k3, k4, k5 = jax.random.split(key, 5)
    head = jax.random.normal(k1, (N, C), dtype=jnp.float32)
    medium = jax.random.normal(k2, (N, C), dtype=jnp.float32)
    few = jax.random.normal(k3, (N, C), dtype=jnp.float32)
    target = jax.random.randint(k4, (N,), 0, C, dtype=jnp.int32)
    reg = jax.random.normal(k5, (), dtype=jnp.float32)

    loss = diverse_expert_loss(target, head, medium, few, reg,
                               cls_num_list, tau=2.0)
    loss = jax.block_until_ready(loss)
    ref = _reference(target, head, medium, few, reg, cls_num_list, tau=2.0)
    np.testing.assert_allclose(np.asarray(loss), np.asarray(ref),
                               rtol=1e-5, atol=1e-5)

    # --- test 2: bf16 inputs, ragged N=37 / C=130, forced multi-tile grid --
    N2, C2 = 37, 130
    cls2 = list(np.linspace(200, 2, C2).astype(np.int64))
    j1, j2, j3, j4, j5 = jax.random.split(jax.random.PRNGKey(1), 5)
    h2 = jax.random.normal(j1, (N2, C2), dtype=jnp.bfloat16)
    m2 = jax.random.normal(j2, (N2, C2), dtype=jnp.bfloat16)
    f2 = jax.random.normal(j3, (N2, C2), dtype=jnp.bfloat16)
    t2 = jax.random.randint(j4, (N2,), 0, C2, dtype=jnp.int32)
    r2 = jax.random.normal(j5, (), dtype=jnp.float32)

    loss2 = diverse_expert_loss(t2, h2, m2, f2, r2, cls2, tau=2.0,
                                max_tile_n=16)   # exercises overhang masking
    loss2 = jax.block_until_ready(loss2)
    ref2 = _reference(t2, h2, m2, f2, r2, cls2, tau=2.0)
    np.testing.assert_allclose(np.asarray(loss2), np.asarray(ref2),
                               rtol=1e-4, atol=1e-4)

    print("KERNEL_OK")
</pallas_src>

<mosaic_0001>
module attributes {stable_mosaic.version = 11 : i64} {
  func.func @_diverse_expert_loss_kernel(%arg0: i32, %arg1: i32, %arg2: memref<8x10xf32, #tpu.memory_space<vmem>>, %arg3: memref<8x10xf32, #tpu.memory_space<vmem>>, %arg4: memref<8x10xf32, #tpu.memory_space<vmem>>, %arg5: memref<1x10xf32, #tpu.memory_space<vmem>>, %arg6: memref<1x10xf32, #tpu.memory_space<vmem>>, %arg7: memref<8x1xi32, #tpu.memory_space<vmem>>, %arg8: memref<1x8x128xf32, #tpu.memory_space<vmem>>) attributes {dimension_semantics = [#tpu.dimension_semantics<parallel>, #tpu.dimension_semantics<arbitrary>], iteration_bounds = array<i64: 1, 1>, scalar_prefetch = 0 : i64, scratch_operands = 0 : i64, tpu.core_type = #tpu.core_type<tc>, window_params = [{transform_indices = @transform_0, window_bounds = array<i64: 8, 10>}, {transform_indices = @transform_1, window_bounds = array<i64: 8, 10>}, {transform_indices = @transform_2, window_bounds = array<i64: 8, 10>}, {pipeline_mode = #tpu.pipeline_mode<synchronous>, transform_indices = @transform_3, window_bounds = array<i64: 1, 10>}, {pipeline_mode = #tpu.pipeline_mode<synchronous>, transform_indices = @transform_4, window_bounds = array<i64: 1, 10>}, {transform_indices = @transform_5, window_bounds = array<i64: 8, 1>}, {transform_indices = @transform_6, window_bounds = array<i64: 1, 8, 128>}]} {
    %c0_i32 = arith.constant 0 : i32
    %0 = arith.cmpi eq, %arg1, %c0_i32 : i32
    %1 = arith.extui %0 : i1 to i32
    %c0_i32_0 = arith.constant 0 : i32
    %2 = arith.cmpi ne, %1, %c0_i32_0 : i32
    scf.if %2 {
      %cst_28 = arith.constant 0.000000e+00 : f32
      %70 = vector.broadcast %cst_28 : f32 to vector<1x8x128xf32>
      %c0_29 = arith.constant 0 : index
      %c0_30 = arith.constant 0 : index
      %c0_31 = arith.constant 0 : index
      %71 = vector.load %arg8[%c0_29, %c0_30, %c0_31] : memref<1x8x128xf32, #tpu.memory_space<vmem>>, vector<1x8x128xf32>
      tpu.vector_store %arg8[%c0_29, %c0_30, %c0_31], %70 {strides = array<i32>} : memref<1x8x128xf32, #tpu.memory_space<vmem>>, vector<1x8x128xf32>,
    } else {
    }
    %c0 = arith.constant 0 : index
    %c0_1 = arith.constant 0 : index
    %3 = vector.load %arg2[%c0, %c0_1] : memref<8x10xf32, #tpu.memory_space<vmem>>, vector<8x10xf32>
    %c0_2 = arith.constant 0 : index
    %c0_3 = arith.constant 0 : index
    %4 = vector.load %arg3[%c0_2, %c0_3] : memref<8x10xf32, #tpu.memory_space<vmem>>, vector<8x10xf32>
    %c0_4 = arith.constant 0 : index
    %c0_5 = arith.constant 0 : index
    %5 = vector.load %arg5[%c0_4, %c0_5] : memref<1x10xf32, #tpu.memory_space<vmem>>, vector<1x10xf32>
    %6 = vector.broadcast %5 : vector<1x10xf32> to vector<8x10xf32>
    %7 = arith.addf %4, %6 : vector<8x10xf32>
    %c0_6 = arith.constant 0 : index
    %c0_7 = arith.constant 0 : index
    %8 = vector.load %arg4[%c0_6, %c0_7] : memref<8x10xf32, #tpu.memory_space<vmem>>, vector<8x10xf32>
    %c0_8 = arith.constant 0 : index
    %c0_9 = arith.constant 0 : index
    %9 = vector.load %arg6[%c0_8, %c0_9] : memref<1x10xf32, #tpu.memory_space<vmem>>, vector<1x10xf32>
    %10 = vector.broadcast %9 : vector<1x10xf32> to vector<8x10xf32>
    %11 = arith.addf %8, %10 : vector<8x10xf32>
    %c0_10 = arith.constant 0 : index
    %c0_11 = arith.constant 0 : index
    %12 = vector.load %arg7[%c0_10, %c0_11] : memref<8x1xi32, #tpu.memory_space<vmem>>, vector<8x1xi32>
    %13 = tpu.iota {dimensions = array<i32: 1>} : vector<8x10xi32>
    %14 = vector.broadcast %12 : vector<8x1xi32> to vector<8x10xi32>
    %15 = arith.cmpi eq, %13, %14 : vector<8x10xi32>
    %16 = arith.addf %3, %7 : vector<8x10xf32>
    %17 = arith.addf %16, %11 : vector<8x10xf32>
    %cst = arith.constant 0.000000e+00 : f32
    %18 = vector.broadcast %cst : f32 to vector<8x10xf32>
    %19 = arith.select %15, %17, %18 : vector<8x10xi1>, vector<8x10xf32>
    %cst_12 = arith.constant dense<0.000000e+00> : vector<8xf32>
    %20 = vector.multi_reduction <add>, %19, %cst_12 [1] : vector<8x10xf32> to vector<8xf32>
    %21 = vector.shape_cast %20 : vector<8xf32> to vector<8x1xf32>
    %cst_13 = arith.constant dense<0xFF800000> : vector<8xf32>
    %22 = vector.multi_reduction <maximumf>, %3, %cst_13 [1] : vector<8x10xf32> to vector<8xf32>
    %23 = vector.shape_cast %22 : vector<8xf32> to vector<8x1xf32>
    %24 = vector.broadcast %23 : vector<8x1xf32> to vector<8x10xf32>
    %25 = arith.subf %3, %24 : vector<8x10xf32>
    %26 = math.exp %25 : vector<8x10xf32>
    %cst_14 = arith.constant dense<0.000000e+00> : vector<8xf32>
    %27 = vector.multi_reduction <add>, %26, %cst_14 [1] : vector<8x10xf32> to vector<8xf32>
    %28 = vector.shape_cast %27 : vector<8xf32> to vector<8x1xf32>
    %29 = math.log %28 : vector<8x1xf32>
    %30 = arith.addf %23, %29 : vector<8x1xf32>
    %cst_15 = arith.constant dense<0xFF800000> : vector<8xf32>
    %31 = vector.multi_reduction <maximumf>, %7, %cst_15 [1] : vector<8x10xf32> to vector<8xf32>
    %32 = vector.shape_cast %31 : vector<8xf32> to vector<8x1xf32>
    %33 = vector.broadcast %32 : vector<8x1xf32> to vector<8x10xf32>
    %34 = arith.subf %7, %33 : vector<8x10xf32>
    %35 = math.exp %34 : vector<8x10xf32>
    %cst_16 = arith.constant dense<0.000000e+00> : vector<8xf32>
    %36 = vector.multi_reduction <add>, %35, %cst_16 [1] : vector<8x10xf32> to vector<8xf32>
    %37 = vector.shape_cast %36 : vector<8xf32> to vector<8x1xf32>
    %38 = math.log %37 : vector<8x1xf32>
    %39 = arith.addf %32, %38 : vector<8x1xf32>
    %40 = arith.addf %30, %39 : vector<8x1xf32>
    %cst_17 = arith.constant dense<0xFF800000> : vector<8xf32>
    %41 = vector.multi_reduction <maximumf>, %11, %cst_17 [1] : vector<8x10xf32> to vector<8xf32>
    %42 = vector.shape_cast %41 : vector<8xf32> to vector<8x1xf32>
    %43 = vector.broadcast %42 : vector<8x1xf32> to vector<8x10xf32>
    %44 = arith.subf %11, %43 : vector<8x10xf32>
    %45 = math.exp %44 : vector<8x10xf32>
    %cst_18 = arith.constant dense<0.000000e+00> : vector<8xf32>
    %46 = vector.multi_reduction <add>, %45, %cst_18 [1] : vector<8x10xf32> to vector<8xf32>
    %47 = vector.shape_cast %46 : vector<8xf32> to vector<8x1xf32>
    %48 = math.log %47 : vector<8x1xf32>
    %49 = arith.addf %42, %48 : vector<8x1xf32>
    %50 = arith.addf %40, %49 : vector<8x1xf32>
    %51 = arith.subf %50, %21 : vector<8x1xf32>
    %52 = tpu.iota {dimensions = array<i32: 0>} : vector<8x1xi32>
    %c1_i32 = arith.constant 1 : i32
    %53 = arith.muli %arg0, %c1_i32 : i32
    %54 = arith.addi %53, %arg1 : i32
    %c8_i32 = arith.constant 8 : i32
    %55 = arith.muli %54, %c8_i32 : i32
    %56 = vector.broadcast %55 : i32 to vector<8x1xi32>
    %57 = arith.addi %56, %52 : vector<8x1xi32>
    %c8_i32_19 = arith.constant 8 : i32
    %58 = vector.broadcast %c8_i32_19 : i32 to vector<8x1xi32>
    %59 = arith.cmpi slt, %57, %58 : vector<8x1xi32>
    %cst_20 = arith.constant 0.000000e+00 : f32
    %60 = vector.broadcast %cst_20 : f32 to vector<8x1xf32>
    %61 = arith.select %59, %51, %60 : vector<8x1xi1>, vector<8x1xf32>
    %c0_21 = arith.constant 0 : index
    %c0_22 = arith.constant 0 : index
    %c0_23 = arith.constant 0 : index
    %62 = vector.load %arg8[%c0_21, %c0_22, %c0_23] : memref<1x8x128xf32, #tpu.memory_space<vmem>>, vector<1x8x128xf32>
    %63 = vector.shape_cast %61 : vector<8x1xf32> to vector<1x8x1xf32>
    %cst_24 = arith.constant dense<0.000000e+00> : vector<1xf32>
    %64 = vector.multi_reduction <add>, %63, %cst_24 [1, 2] : vector<1x8x1xf32> to vector<1xf32>
    %65 = vector.shape_cast %64 : vector<1xf32> to vector<1x1x1xf32>
    %66 = vector.extract %65[0, 0, 0] : f32 from vector<1x1x1xf32>
    %67 = vector.broadcast %66 : f32 to vector<1x8x128xf32>
    %68 = arith.addf %62, %67 : vector<1x8x128xf32>
    %c0_25 = arith.constant 0 : index
    %c0_26 = arith.constant 0 : index
    %c0_27 = arith.constant 0 : index
    %69 = vector.load %arg8[%c0_25, %c0_26, %c0_27] : memref<1x8x128xf32, #tpu.memory_space<vmem>>, vector<1x8x128xf32>
    tpu.vector_store %arg8[%c0_25, %c0_26, %c0_27], %68 {strides = array<i32>} : memref<1x8x128xf32, #tpu.memory_space<vmem>>, vector<1x8x128xf32>,
    return
  }
  func.func @transform_0(%arg0: i32, %arg1: i32) -> (i32, i32) {
    %c1_i32 = arith.constant 1 : i32
    %0 = arith.muli %arg0, %c1_i32 : i32
    %1 = arith.addi %0, %arg1 : i32
    %c0_i32 = arith.constant 0 : i32
    %2 = arith.minsi %1, %c0_i32 : i32
    %c0_i32_0 = arith.constant 0 : i32
    %c0_i32_1 = arith.constant 0 : i32
    return %2, %c0_i32_0 : i32, i32
  }
  func.func @transform_1(%arg0: i32, %arg1: i32) -> (i32, i32) {
    %c1_i32 = arith.constant 1 : i32
    %0 = arith.muli %arg0, %c1_i32 : i32
    %1 = arith.addi %0, %arg1 : i32
    %c0_i32 = arith.constant 0 : i32
    %2 = arith.minsi %1, %c0_i32 : i32
    %c0_i32_0 = arith.constant 0 : i32
    %c0_i32_1 = arith.constant 0 : i32
    return %2, %c0_i32_0 : i32, i32
  }
  func.func @transform_2(%arg0: i32, %arg1: i32) -> (i32, i32) {
    %c1_i32 = arith.constant 1 : i32
    %0 = arith.muli %arg0, %c1_i32 : i32
    %1 = arith.addi %0, %arg1 : i32
    %c0_i32 = arith.constant 0 : i32
    %2 = arith.minsi %1, %c0_i32 : i32
    %c0_i32_0 = arith.constant 0 : i32
    %c0_i32_1 = arith.constant 0 : i32
    return %2, %c0_i32_0 : i32, i32
  }
  func.func @transform_3(%arg0: i32, %arg1: i32) -> (i32, i32) {
    %c0_i32 = arith.constant 0 : i32
    %c0_i32_0 = arith.constant 0 : i32
    %c0_i32_1 = arith.constant 0 : i32
    return %c0_i32, %c0_i32_0 : i32, i32
  }
  func.func @transform_4(%arg0: i32, %arg1: i32) -> (i32, i32) {
    %c0_i32 = arith.constant 0 : i32
    %c0_i32_0 = arith.constant 0 : i32
    %c0_i32_1 = arith.constant 0 : i32
    return %c0_i32, %c0_i32_0 : i32, i32
  }
  func.func @transform_5(%arg0: i32, %arg1: i32) -> (i32, i32) {
    %c1_i32 = arith.constant 1 : i32
    %0 = arith.muli %arg0, %c1_i32 : i32
    %1 = arith.addi %0, %arg1 : i32
    %c0_i32 = arith.constant 0 : i32
    %2 = arith.minsi %1, %c0_i32 : i32
    %c0_i32_0 = arith.constant 0 : i32
    %c0_i32_1 = arith.constant 0 : i32
    return %2, %c0_i32_0 : i32, i32
  }
  func.func @transform_6(%arg0: i32, %arg1: i32) -> (i32, i32, i32) {
    %c0_i32 = arith.constant 0 : i32
    %c0_i32_0 = arith.constant 0 : i32
    %c0_i32_1 = arith.constant 0 : i32
    return %arg0, %c0_i32, %c0_i32_0 : i32, i32, i32
  }
}

</mosaic_0001>

<llo_original>
// kernel: tpu_custom_call.1
$region0: #{tpu_custom_call.1}
  #allocation0 [shape = 'u32[]', space=smem, size = 0x4, offset = 0x4, fixed_abs, tag = 'smem constant byte address 0x4 - core index']
  #allocation1 [shape = 'u32[144,128]{1,0:T(1,128)}', space=vmem, size = 0x12000, scoped, tag = 'internal scratch']
  %s0 = inlined_call_operand.vmem [shape: f32[8,10], index: 0, kind: input, shape index: {}]
  %s1 = inlined_call_operand.hbm [shape: f32[8,10], index: 1, kind: input, shape index: {}]
  %s2 = inlined_call_operand.vmem [shape: f32[8,10], index: 2, kind: input, shape index: {}]
  %s3 = inlined_call_operand.vmem [shape: f32[1,10], index: 3, kind: input, shape index: {}]
  %s4 = inlined_call_operand.vmem [shape: f32[1,10], index: 4, kind: input, shape index: {}]
  %s5 = inlined_call_operand.vmem [shape: s32[8,1], index: 5, kind: input, shape index: {}]
  %s6 = inlined_call_operand.hbm [shape: f32[1,8,128], index: 6, kind: output, shape index: {}]
  %s7 = sld [smem:[#allocation0]]
  $region42: #{tpu_custom_call.1} parent=0
    _
  %s9 = ssub.s32 1, %s7
  %s10 = scalar_select 0, %s9, %s7
  $region1: #{tpu_custom_call.1} parent=0
    #allocation2 [shape = 'u8[4096]{0}', space=vmem, size = 0x1000, scoped, tag = 'input window, operand 1, single buffered']
    #allocation3 [shape = 's32[1]{0}', space=sflag, size = 0x4, scoped, tag = 'scoped memory for tpu_custom_call.1']
    #allocation4 [shape = 's32[1]{0}', space=sflag, size = 0x4, scoped, tag = 'scoped memory for tpu_custom_call.1']
    #allocation5 [shape = 'u8[4096]{0}', space=vmem, size = 0x1000, scoped, tag = 'output window, operand 0, single buffered']
    %11 = vsyncpa [#allocation3], 0
    %12 = vsyncpa [#allocation4], 0
    // Predicated region
    $region2: #{tpu_custom_call.1} parent=1 // pred_check
      _
    $region3: #{tpu_custom_call.1} parent=1 // pred_check_branch
      %14 = sbr.rel (0) target = $region5
    $region4: #{tpu_custom_call.1} parent=1 // pred_region
      %s15 = sadd.s32 0, 0
      %p16 = scmp.lt.s32.totalorder %s15, 0
      %s17 = scalar_select %p16, %s15, 0
      %p18 = scmp.lt.s32.totalorder %s17, 0
      %s19 = scalar_select %p18, %s17, 0
      %s20 = smul.addr %s19, 8
      %s21 = scalar_lea.vmem %s0, %s20
      %s22 = sadd.s32 0, 0
      %p23 = scmp.lt.s32.totalorder %s22, 0
      %s24 = scalar_select %p23, %s22, 0
    $region5: #{tpu_custom_call.1} parent=1 // pred_fallthru
      _
    // Predicated region
    $region6: #{tpu_custom_call.1} parent=1 // pred_check
      _
    $region7: #{tpu_custom_call.1} parent=1 // pred_check_branch
      %26 = sbr.rel (0) target = $region9
    $region8: #{tpu_custom_call.1} parent=1 // pred_region
      %s27 = sadd.s32 0, 0
      %p28 = scmp.lt.s32.totalorder %s27, 0
      %s29 = scalar_select %p28, %s27, 0
      %s31 = ssub.s32 128, 128
      %32 = vsyncadd [#allocation3], %s31
      %s33 = smul.addr %s29, 128
      %s34 = scalar_lea.hbm %s1, %s33
      %s36 = sshll.u32 [#allocation2], 4
      %s37 = int_to_ptr.vmem [resolvable:$true] %s36
      %39 = dma.hbm_to_vmem [thread:$0]  %s34, 128, %s37, [#allocation3]
    $region9: #{tpu_custom_call.1} parent=1 // pred_fallthru
      _
    // Predicated region
    $region10: #{tpu_custom_call.1} parent=1 // pred_check
      _
    $region11: #{tpu_custom_call.1} parent=1 // pred_check_branch
      %41 = sbr.rel (0) target = $region13
    $region12: #{tpu_custom_call.1} parent=1 // pred_region
      %s42 = sadd.s32 0, 0
      %p43 = scmp.lt.s32.totalorder %s42, 0
      %s44 = scalar_select %p43, %s42, 0
      %p45 = scmp.lt.s32.totalorder %s44, 0
      %s46 = scalar_select %p45, %s44, 0
      %s47 = smul.addr %s46, 8
      %s48 = scalar_lea.vmem %s2, %s47
      %s49 = sadd.s32 0, 0
      %p50 = scmp.lt.s32.totalorder %s49, 0
      %s51 = scalar_select %p50, %s49, 0
    $region13: #{tpu_custom_call.1} parent=1 // pred_fallthru
      _
    // Predicated region
    $region14: #{tpu_custom_call.1} parent=1 // pred_check
      _
    $region15: #{tpu_custom_call.1} parent=1 // pred_check_branch
      %53 = sbr.rel (0) target = $region17
    $region16: #{tpu_custom_call.1} parent=1 // pred_region
      _
    $region17: #{tpu_custom_call.1} parent=1 // pred_fallthru
      _
    // Predicated region
    $region18: #{tpu_custom_call.1} parent=1 // pred_check
      _
    $region19: #{tpu_custom_call.1} parent=1 // pred_check_branch
      %55 = sbr.rel (0) target = $region21
    $region20: #{tpu_custom_call.1} parent=1 // pred_region
      _
    $region21: #{tpu_custom_call.1} parent=1 // pred_fallthru
      _
    // Predicated region
    $region22: #{tpu_custom_call.1} parent=1 // pred_check
      _
    $region23: #{tpu_custom_call.1} parent=1 // pred_check_branch
      %57 = sbr.rel (0) target = $region25
    $region24: #{tpu_custom_call.1} parent=1 // pred_region
      %s58 = sadd.s32 0, 0
      %p59 = scmp.lt.s32.totalorder %s58, 0
      %s60 = scalar_select %p59, %s58, 0
      %p61 = scmp.lt.s32.totalorder %s60, 0
      %s62 = scalar_select %p61, %s60, 0
      %s63 = smul.addr %s62, 8
      %s64 = scalar_lea.vmem %s5, %s63
      %s65 = sadd.s32 0, 0
      %p66 = scmp.lt.s32.totalorder %s65, 0
      %s67 = scalar_select %p66, %s65, 0
    $region25: #{tpu_custom_call.1} parent=1 // pred_fallthru
      _
    // Predicated region
    $region26: #{tpu_custom_call.1} parent=1 // pred_check
      _
    $region27: #{tpu_custom_call.1} parent=1 // pred_check_branch
      %69 = sbr.rel (0) target = $region29
    $region28: #{tpu_custom_call.1} parent=1 // pred_region
      %70 = dma.done [#allocation3], 128
    $region29: #{tpu_custom_call.1} parent=1 // pred_fallthru
      _
    %s71 = sadd.s32 0, 0
    %p72 = scmp.lt.s32.totalorder %s71, 0
    %s73 = scalar_select %p72, %s71, 0
    %p74 = scmp.lt.s32.totalorder %s73, 0
    %s75 = scalar_select %p74, %s73, 0
    %s76 = smul.addr %s75, 8
    %s77 = scalar_lea.vmem %s0, %s76
    %s78 = sadd.s32 0, 0
    %p79 = scmp.lt.s32.totalorder %s78, 0
    %s80 = scalar_select %p79, %s78, 0
    %p81 = scmp.lt.s32.totalorder %s80, 0
    %s82 = scalar_select %p81, %s80, 0
    %s83 = smul.addr %s82, 8
    %s84 = scalar_lea.vmem %s2, %s83
    %s85 = sadd.s32 0, 0
    %p86 = scmp.lt.s32.totalorder %s85, 0
    %s87 = scalar_select %p86, %s85, 0
    %p88 = scmp.lt.s32.totalorder %s87, 0
    %s89 = scalar_select %p88, %s87, 0
    %s90 = smul.addr %s89, 8
    %s91 = scalar_lea.vmem %s5, %s90
    %s92 = sadd.s32 0, 0
    %p93 = scmp.lt.s32.totalorder %s92, 0
    %s94 = scalar_select %p93, %s92, 0
    %p95 = scmp.lt.s32.totalorder %s94, 0
    %s96 = scalar_select %p95, %s94, 0
    %s97 = smul.addr %s96, 8
    %s98 = scalar_lea.vmem %s0, %s97
    %s99 = sadd.s32 0, 0
    %p100 = scmp.lt.s32.totalorder %s99, 0
    %s101 = scalar_select %p100, %s99, 0
    %s102 = sadd.s32 0, 0
    %p103 = scmp.lt.s32.totalorder %s102, 0
    %s104 = scalar_select %p103, %s102, 0
    %s105 = sadd.s32 0, 0
    %p106 = scmp.lt.s32.totalorder %s105, 0
    %s107 = scalar_select %p106, %s105, 0
    %p108 = scmp.lt.s32.totalorder %s107, 0
    %s109 = scalar_select %p108, %s107, 0
    %s110 = smul.addr %s109, 8
    %s111 = scalar_lea.vmem %s2, %s110
    %s112 = sadd.s32 0, 0
    %p113 = scmp.lt.s32.totalorder %s112, 0
    %s114 = scalar_select %p113, %s112, 0
    %s115 = sadd.s32 0, 0
    %p116 = scmp.lt.s32.totalorder %s115, 0
    %s117 = scalar_select %p116, %s115, 0
    %p118 = scmp.lt.s32.totalorder %s117, 0
    %s119 = scalar_select %p118, %s117, 0
    %s120 = smul.addr %s119, 8
    %s121 = scalar_lea.vmem %s5, %s120
    %s122 = sadd.s32 0, 0
    %p123 = scmp.lt.s32.totalorder %s122, 0
    %s124 = scalar_select %p123, %s122, 0
    %p125 = scmp.eq.s32.totalorder 0, 0
    // Predicated region
    $region30: #{tpu_custom_call.1} parent=1 // pred_check
      %p126 = pneg %p125
    $region31: #{tpu_custom_call.1} parent=1 // pred_check_branch
      %128 = sbr.rel (%p126) target = $region33
    $region32: #{tpu_custom_call.1} parent=1 // pred_region
      %129 = vst [vmem:[#allocation5] sm:$0xff] 0.0
    $region33: #{tpu_custom_call.1} parent=1 // pred_fallthru
      _
    %v130 = vld [vmem:[%s98] sm:$0xff]
    %v131 = vld [vmem:[#allocation2] sm:$0xff]
    %v132 = vld [vmem:[%s3] sm:$0x1]
    %v134 = vlaneseq
    %v135 = vshrl.u32 %v134, 7
    %v136 = vsub.s32 0, %v135
    %v137 = vrot.slane %v132, %v136
    %v139 = vadd.f32 %v131, %v137
    %v140 = vld [vmem:[%s111] sm:$0xff]
    %v141 = vld [vmem:[%s4] sm:$0x1]
    %v143 = vlaneseq
    %v144 = vshrl.u32 %v143, 7
    %v145 = vsub.s32 0, %v144
    %v146 = vrot.slane %v141, %v145
    %v148 = vadd.f32 %v140, %v146
    %v149 = vld [vmem:[%s121] sm:$0xff]
    %v150 = vlaneseq
    %v151 = vand.u32 %v150, 127
    %152 = vset.pattern.permute.xlu0 0
    %153 = vperm.xlu0 %152, %v149
    %v154 = vpop.permute.xlu0 %153
    %vm155 = vcmp.eq.s32.totalorder %v151, %v154
    %v156 = vadd.f32 %v130, %v139
    %v157 = vadd.f32 %v156, %v148
    %v158 = vsel %vm155, %v157, 0.0
    %vm159 = vcmask 80896
    %v160 = vsel %vm159, %v158, 0.0
    %161 = vadd.xlane.f32.xlu0 %v160
    %v162 = vpop.xlane.xlu0 %161
    %v163 = vsel %vm159, %v130, -inf
    %164 = vmax.xlane.f32.xlu0 %v163
    %v165 = vpop.xlane.xlu0 %164
    %v166 = vsub.f32 %v130, %v165
    %v167 = vmul.f32 %v166, 1.442695
    %v168 = vpow.pop %v167
    %v169 = vsel %vm159, %v168, 0.0
    %170 = vadd.xlane.f32.xlu0 %v169
    %v171 = vpop.xlane.xlu0 %170
    %v172 = vlog2.pop %v171
    %v173 = vmul.f32 %v172, 0.6931472
    %v174 = vadd.f32 %v165, %v173
    %v175 = vsel %vm159, %v139, -inf
    %176 = vmax.xlane.f32.xlu0 %v175
    %v177 = vpop.xlane.xlu0 %176
    %v178 = vsub.f32 %v139, %v177
    %v179 = vmul.f32 %v178, 1.442695
    %v180 = vpow.pop %v179
    %v181 = vsel %vm159, %v180, 0.0
    %182 = vadd.xlane.f32.xlu0 %v181
    %v183 = vpop.xlane.xlu0 %182
    %v184 = vlog2.pop %v183
    %v185 = vmul.f32 %v184, 0.6931472
    %v186 = vadd.f32 %v177, %v185
    %v187 = vadd.f32 %v174, %v186
    %v188 = vsel %vm159, %v148, -inf
    %189 = vmax.xlane.f32.xlu0 %v188
    %v190 = vpop.xlane.xlu0 %189
    %v191 = vsub.f32 %v148, %v190
    %v192 = vmul.f32 %v191, 1.442695
    %v193 = vpow.pop %v192
    %v194 = vsel %vm159, %v193, 0.0
    %195 = vadd.xlane.f32.xlu0 %v194
    %v196 = vpop.xlane.xlu0 %195
    %v197 = vlog2.pop %v196
    %v198 = vmul.f32 %v197, 0.6931472
    %v199 = vadd.f32 %v190, %v198
    %v200 = vadd.f32 %v187, %v199
    %v201 = vsub.f32 %v200, %v162
    %v202 = vlaneseq
    %v203 = vshrl.u32 %v202, 7
    %s204 = sadd.s32 0, 0
    %s205 = smul.u32 %s204, 8
    %v206 = vstv %s205
    %v207 = vadd.s32 %v206, %v203
    %vm208 = vcmp.lt.s32.totalorder %v207, 8
    %v209 = vsel %vm208, %v201, 0.0
    %v210 = vld [vmem:[#allocation5] sm:$0xff]
    %vm211 = vcmask 7168
    %v212 = vsel %vm211, %v209, 0.0
    %213 = vadd.xlane.f32.xlu0 %v212
    %v214 = vpop.xlane.xlu0 %213
    %v215 = vrot.slane %v214, 4
    %v216 = vadd.f32 %v214, %v215
    %v217 = vrot.slane %v216, 2
    %v218 = vadd.f32 %v216, %v217
    %v219 = vrot.slane %v218, 1
    %v220 = vadd.f32 %v218, %v219
    %s221 = vtos %v220
    %v222 = vstv %s221
    %v223 = vadd.f32 %v210, %v222
    %224 = vst [vmem:[#allocation5] sm:$0xff] %v223
    // Predicated region
    $region34: #{tpu_custom_call.1} parent=1 // pred_check
      _
    $region35: #{tpu_custom_call.1} parent=1 // pred_check_branch
      %226 = sbr.rel (0) target = $region37
    $region36: #{tpu_custom_call.1} parent=1 // pred_region
      %s228 = ssub.s32 128, 128
      %229 = vsyncadd [#allocation4], %s228
      %s231 = sshll.u32 [#allocation5], 4
      %s232 = int_to_ptr.vmem [resolvable:$true] %s231
      %234 = dma.vmem_to_hbm [thread:$0]  %s232, 128, %s6, [#allocation4]
    $region37: #{tpu_custom_call.1} parent=1 // pred_fallthru
      _
    // Predicated region
    $region38: #{tpu_custom_call.1} parent=1 // pred_check
      _
    $region39: #{tpu_custom_call.1} parent=1 // pred_check_branch
      %236 = sbr.rel (0) target = $region41
    $region40: #{tpu_custom_call.1} parent=1 // pred_region
      %237 = dma.done [#allocation4], 128
    $region41: #{tpu_custom_call.1} parent=1 // pred_fallthru
      _
    %238 = vsyncpa [#allocation3], 1
    %239 = vsyncpa [#allocation4], 1

</llo_original>
